<compile_context>
chip_gen: v6e
topology: v6e:2x2x1
jax: 0.10.0
libtpu: 0.0.40
codegen_flags: <defaults>
</compile_context>

<pallas_src>
import functools

import jax
import jax.numpy as jnp
from jax.experimental import pallas as pl
from jax.experimental.pallas import tpu as pltpu


def _actor_kernel(x_ref, w1_ref, w2_ref, w3_ref, b_ref, out_ref, *,
                  hidden_dim, output_dim):
    """One batch tile: relu(fc1) -> relu(fc2) -> relu(head) -> masked softmax."""
    x = x_ref[...]                                   # (TB, D_in) f32
    b = b_ref[...]                                   # (3, L) f32 — packed biases
    o_pad = out_ref.shape[1]                         # lane-dense output width (>=128)

    b1 = b[0:1, :hidden_dim]
    b2 = b[1:2, :hidden_dim]
    b3 = b[2:3, :o_pad]

    # fc1 + ReLU  (bf16 MXU operands, f32 accumulate; elementwise stays f32)
    h1 = jnp.dot(x.astype(jnp.bfloat16), w1_ref[...],
                 preferred_element_type=jnp.float32) + b1
    h1 = jnp.maximum(h1, 0.0)                        # (TB, H)

    # fc2 + ReLU
    h2 = jnp.dot(h1.astype(jnp.bfloat16), w2_ref[...],
                 preferred_element_type=jnp.float32) + b2
    h2 = jnp.maximum(h2, 0.0)                        # (TB, H)

    # actor_head + ReLU  (head weight is zero-padded to o_pad columns)
    logits = jnp.dot(h2.astype(jnp.bfloat16), w3_ref[...],
                     preferred_element_type=jnp.float32) + b3
    logits = jnp.maximum(logits, 0.0)                # (TB, O_pad)

    # Softmax over dim=1, restricted to the first `output_dim` real columns.
    col = jax.lax.broadcasted_iota(jnp.int32, logits.shape, 1)
    valid = col < output_dim
    masked = jnp.where(valid, logits, jnp.float32(-1e30))
    m = jnp.max(masked, axis=1, keepdims=True)
    e = jnp.where(valid, jnp.exp(masked - m), 0.0)
    s = jnp.sum(e, axis=1, keepdims=True)
    out_ref[...] = (e * pl.reciprocal(s, approx=True)).astype(out_ref.dtype)


def pack_actor_params(params):
    """One-time packing: weights -> bf16 (MXU native), biases -> one f32 operand,
    head weight zero-padded to a lane-dense (>=128) output width."""
    w1 = params["w1"].astype(jnp.bfloat16)                       # (D_in, H)
    w2 = params["w2"].astype(jnp.bfloat16)                       # (H, H)
    w3 = params["w3"]                                            # (H, O)
    H = w2.shape[0]
    O = w3.shape[1]
    O_pad = 128 * pl.cdiv(O, 128)
    w3p = jnp.zeros((H, O_pad), jnp.bfloat16).at[:, :O].set(w3.astype(jnp.bfloat16))

    L = max(H, O_pad)
    bias = jnp.zeros((3, L), jnp.float32)
    bias = bias.at[0, :H].set(jnp.reshape(params["b1"], (-1,)))
    bias = bias.at[1, :H].set(jnp.reshape(params["b2"], (-1,)))
    bias = bias.at[2, :O].set(jnp.reshape(params["b3"], (-1,)))

    return {"w1": w1, "w2": w2, "w3": w3p, "bias": bias,
            "hidden_dim": H, "output_dim": O, "output_pad": O_pad}


def actor_forward(state, packed, *, block_b=128):
    """state: (B, input_dim) f32. packed: output of pack_actor_params."""
    B, d_in = state.shape
    H = packed["hidden_dim"]
    O = packed["output_dim"]
    O_pad = packed["output_pad"]

    TB = block_b
    B_pad = TB * pl.cdiv(B, TB)
    if B_pad != B:
        # Pad batch so every tile is fully defined (padded rows are discarded).
        state = jnp.pad(state, ((0, B_pad - B), (0, 0)))

    resident = lambda i: (0, 0)   # weights/biases: same block every grid step
    kernel = functools.partial(_actor_kernel, hidden_dim=H, output_dim=O)

    # TODO(synk): for hidden_dim >~ 2k on v7x (64 MiB VMEM), tile w2/w3 along K/N
    # or raise vmem_limit_bytes instead of keeping all weights resident.
    out = pl.pallas_call(
        kernel,
        out_shape=jax.ShapeDtypeStruct((B_pad, O_pad), jnp.float32),
        grid_spec=pltpu.PrefetchScalarGridSpec(
            num_scalar_prefetch=0,
            grid=(B_pad // TB,),
            in_specs=[
                pl.BlockSpec((TB, d_in), lambda i: (i, 0)),        # x: pipelined tile
                pl.BlockSpec(packed["w1"].shape, resident),        # weights resident
                pl.BlockSpec(packed["w2"].shape, resident),
                pl.BlockSpec(packed["w3"].shape, resident),
                pl.BlockSpec(packed["bias"].shape, resident),
            ],
            out_specs=pl.BlockSpec((TB, O_pad), lambda i: (i, 0)),  # lane-dense slab
        ),
        compiler_params=pltpu.CompilerParams(
            dimension_semantics=("parallel",),                      # v7x: 2 TCs
        ),
    )(state, packed["w1"], packed["w2"], packed["w3"], packed["bias"])

    return out[:B, :O]


def xavier_uniform(key, fan_in, fan_out, dtype=jnp.float32):
    # Matches torch.nn.init.xavier_uniform_ (gain=1).
    limit = (6.0 / (fan_in + fan_out)) ** 0.5
    return jax.random.uniform(key, (fan_in, fan_out), dtype, minval=-limit, maxval=limit)


def init_actor_params(key, input_dim, hidden_dim, output_dim):
    k1, k2, k3 = jax.random.split(key, 3)
    return {
        # Stored as (in, out): transpose of PyTorch's (out, in) weight layout.
        "w1": xavier_uniform(k1, input_dim, hidden_dim),
        "b1": jnp.zeros((hidden_dim,), jnp.float32),
        "w2": xavier_uniform(k2, hidden_dim, hidden_dim),
        "b2": jnp.zeros((hidden_dim,), jnp.float32),
        "w3": xavier_uniform(k3, hidden_dim, output_dim),
        "b3": jnp.zeros((output_dim,), jnp.float32),
    }


def actor_reference(state, params):
    """Plain-JAX reference using the same bf16-matmul / f32-accumulate recipe."""
    bf = jnp.bfloat16
    h1 = jnp.maximum(jnp.dot(state.astype(bf), params["w1"].astype(bf),
                             preferred_element_type=jnp.float32) + params["b1"], 0.0)
    h2 = jnp.maximum(jnp.dot(h1.astype(bf), params["w2"].astype(bf),
                             preferred_element_type=jnp.float32) + params["b2"], 0.0)
    lo = jnp.maximum(jnp.dot(h2.astype(bf), params["w3"].astype(bf),
                             preferred_element_type=jnp.float32) + params["b3"], 0.0)
    return jax.nn.softmax(lo, axis=1)


if __name__ == "__main__":
    # Small CartPole-like shapes: batch=2, state_dim=4, hidden=32, actions=2.
    batch, input_dim, hidden_dim, output_dim = 2, 4, 32, 2

    key = jax.random.PRNGKey(0)
    k_state, k_params = jax.random.split(key)
    state = jax.random.normal(k_state, (batch, input_dim), jnp.float32)
    params = init_actor_params(k_params, input_dim, hidden_dim, output_dim)

    packed = pack_actor_params(params)
    probs = actor_forward(state, packed)
    probs = jax.block_until_ready(probs)

    ref = actor_reference(state, params)
    assert probs.shape == (batch, output_dim)
    assert jnp.allclose(probs, ref, atol=5e-3, rtol=5e-3)
    assert jnp.allclose(jnp.sum(probs, axis=1), 1.0, atol=5e-3)

    print("KERNEL_OK")
</pallas_src>

<mosaic_0001>
module attributes {stable_mosaic.version = 11 : i64} {
  func.func @_actor_kernel(%arg0: i32, %arg1: memref<128x4xf32, #tpu.memory_space<vmem>>, %arg2: memref<4x32xbf16, #tpu.memory_space<vmem>>, %arg3: memref<32x32xbf16, #tpu.memory_space<vmem>>, %arg4: memref<32x128xbf16, #tpu.memory_space<vmem>>, %arg5: memref<3x128xf32, #tpu.memory_space<vmem>>, %arg6: memref<128x128xf32, #tpu.memory_space<vmem>>) attributes {dimension_semantics = [#tpu.dimension_semantics<parallel>], iteration_bounds = array<i64: 1>, scalar_prefetch = 0 : i64, scratch_operands = 0 : i64, tpu.core_type = #tpu.core_type<tc>, window_params = [{transform_indices = @transform_0, window_bounds = array<i64: 128, 4>}, {pipeline_mode = #tpu.pipeline_mode<synchronous>, transform_indices = @transform_1, window_bounds = array<i64: 4, 32>}, {pipeline_mode = #tpu.pipeline_mode<synchronous>, transform_indices = @transform_2, window_bounds = array<i64: 32, 32>}, {pipeline_mode = #tpu.pipeline_mode<synchronous>, transform_indices = @transform_3, window_bounds = array<i64: 32, 128>}, {pipeline_mode = #tpu.pipeline_mode<synchronous>, transform_indices = @transform_4, window_bounds = array<i64: 3, 128>}, {transform_indices = @transform_5, window_bounds = array<i64: 128, 128>}]} {
    %c0 = arith.constant 0 : index
    %c0_0 = arith.constant 0 : index
    %0 = vector.load %arg1[%c0, %c0_0] : memref<128x4xf32, #tpu.memory_space<vmem>>, vector<128x4xf32>
    %c0_1 = arith.constant 0 : index
    %c0_2 = arith.constant 0 : index
    %1 = vector.load %arg5[%c0_1, %c0_2] : memref<3x128xf32, #tpu.memory_space<vmem>>, vector<3x128xf32>
    %2 = vector.extract_strided_slice %1 {offsets = [0, 0], sizes = [1, 32], strides = [1, 1]} : vector<3x128xf32> to vector<1x32xf32>
    %3 = vector.extract_strided_slice %1 {offsets = [1, 0], sizes = [1, 32], strides = [1, 1]} : vector<3x128xf32> to vector<1x32xf32>
    %4 = vector.extract_strided_slice %1 {offsets = [2, 0], sizes = [1, 128], strides = [1, 1]} : vector<3x128xf32> to vector<1x128xf32>
    %5 = arith.truncf %0 : vector<128x4xf32> to vector<128x4xbf16>
    %c0_3 = arith.constant 0 : index
    %c0_4 = arith.constant 0 : index
    %6 = vector.load %arg2[%c0_3, %c0_4] : memref<4x32xbf16, #tpu.memory_space<vmem>>, vector<4x32xbf16>
    %cst = arith.constant dense<0.000000e+00> : vector<128x32xf32>
    %7 = tpu.matmul %5, %6, %cst {dimension_numbers = #tpu.dot_dimension_numbers<[1], [0], [0], [1], [0, 0, 1, 1], [], []>} : vector<128x4xbf16>, vector<4x32xbf16>, vector<128x32xf32> -> vector<128x32xf32>
    %8 = vector.broadcast %2 : vector<1x32xf32> to vector<128x32xf32>
    %9 = arith.addf %7, %8 : vector<128x32xf32>
    %cst_5 = arith.constant 0.000000e+00 : f32
    %10 = vector.broadcast %cst_5 : f32 to vector<128x32xf32>
    %11 = arith.maximumf %9, %10 : vector<128x32xf32>
    %12 = arith.truncf %11 : vector<128x32xf32> to vector<128x32xbf16>
    %c0_6 = arith.constant 0 : index
    %c0_7 = arith.constant 0 : index
    %13 = vector.load %arg3[%c0_6, %c0_7] : memref<32x32xbf16, #tpu.memory_space<vmem>>, vector<32x32xbf16>
    %cst_8 = arith.constant dense<0.000000e+00> : vector<128x32xf32>
    %14 = tpu.matmul %12, %13, %cst_8 {dimension_numbers = #tpu.dot_dimension_numbers<[1], [0], [0], [1], [0, 0, 1, 1], [], []>} : vector<128x32xbf16>, vector<32x32xbf16>, vector<128x32xf32> -> vector<128x32xf32>
    %15 = vector.broadcast %3 : vector<1x32xf32> to vector<128x32xf32>
    %16 = arith.addf %14, %15 : vector<128x32xf32>
    %cst_9 = arith.constant 0.000000e+00 : f32
    %17 = vector.broadcast %cst_9 : f32 to vector<128x32xf32>
    %18 = arith.maximumf %16, %17 : vector<128x32xf32>
    %19 = arith.truncf %18 : vector<128x32xf32> to vector<128x32xbf16>
    %c0_10 = arith.constant 0 : index
    %c0_11 = arith.constant 0 : index
    %20 = vector.load %arg4[%c0_10, %c0_11] : memref<32x128xbf16, #tpu.memory_space<vmem>>, vector<32x128xbf16>
    %cst_12 = arith.constant dense<0.000000e+00> : vector<128x128xf32>
    %21 = tpu.matmul %19, %20, %cst_12 {dimension_numbers = #tpu.dot_dimension_numbers<[1], [0], [0], [1], [0, 0, 1, 1], [], []>} : vector<128x32xbf16>, vector<32x128xbf16>, vector<128x128xf32> -> vector<128x128xf32>
    %22 = vector.broadcast %4 : vector<1x128xf32> to vector<128x128xf32>
    %23 = arith.addf %21, %22 : vector<128x128xf32>
    %cst_13 = arith.constant 0.000000e+00 : f32
    %24 = vector.broadcast %cst_13 : f32 to vector<128x128xf32>
    %25 = arith.maximumf %23, %24 : vector<128x128xf32>
    %26 = tpu.iota {dimensions = array<i32: 1>} : vector<128x128xi32>
    %c2_i32 = arith.constant 2 : i32
    %27 = vector.broadcast %c2_i32 : i32 to vector<128x128xi32>
    %28 = arith.cmpi slt, %26, %27 : vector<128x128xi32>
    %cst_14 = arith.constant -1.000000e+30 : f32
    %29 = vector.broadcast %cst_14 : f32 to vector<128x128xf32>
    %30 = arith.select %28, %25, %29 : vector<128x128xi1>, vector<128x128xf32>
    %cst_15 = arith.constant dense<0xFF800000> : vector<128xf32>
    %31 = vector.multi_reduction <maximumf>, %30, %cst_15 [1] : vector<128x128xf32> to vector<128xf32>
    %32 = vector.shape_cast %31 : vector<128xf32> to vector<128x1xf32>
    %33 = vector.broadcast %32 : vector<128x1xf32> to vector<128x128xf32>
    %34 = arith.subf %30, %33 : vector<128x128xf32>
    %35 = math.exp %34 : vector<128x128xf32>
    %cst_16 = arith.constant 0.000000e+00 : f32
    %36 = vector.broadcast %cst_16 : f32 to vector<128x128xf32>
    %37 = arith.select %28, %35, %36 : vector<128x128xi1>, vector<128x128xf32>
    %cst_17 = arith.constant dense<0.000000e+00> : vector<128xf32>
    %38 = vector.multi_reduction <add>, %37, %cst_17 [1] : vector<128x128xf32> to vector<128xf32>
    %39 = vector.shape_cast %38 : vector<128xf32> to vector<128x1xf32>
    %40 = tpu.reciprocal %39 {approx = true} : vector<128x1xf32> -> vector<128x1xf32>
    %41 = vector.broadcast %40 : vector<128x1xf32> to vector<128x128xf32>
    %42 = arith.mulf %37, %41 : vector<128x128xf32>
    %c0_18 = arith.constant 0 : index
    %c0_19 = arith.constant 0 : index
    %43 = vector.load %arg6[%c0_18, %c0_19] : memref<128x128xf32, #tpu.memory_space<vmem>>, vector<128x128xf32>
    tpu.vector_store %arg6[%c0_18, %c0_19], %42 {strides = array<i32>} : memref<128x128xf32, #tpu.memory_space<vmem>>, vector<128x128xf32>,
    return
  }
  func.func @transform_0(%arg0: i32) -> (i32, i32) {
    %c0_i32 = arith.constant 0 : i32
    %c0_i32_0 = arith.constant 0 : i32
    return %arg0, %c0_i32 : i32, i32
  }
  func.func @transform_1(%arg0: i32) -> (i32, i32) {
    %c0_i32 = arith.constant 0 : i32
    %c0_i32_0 = arith.constant 0 : i32
    %c0_i32_1 = arith.constant 0 : i32
    return %c0_i32, %c0_i32_0 : i32, i32
  }
  func.func @transform_2(%arg0: i32) -> (i32, i32) {
    %c0_i32 = arith.constant 0 : i32
    %c0_i32_0 = arith.constant 0 : i32
    %c0_i32_1 = arith.constant 0 : i32
    return %c0_i32, %c0_i32_0 : i32, i32
  }
  func.func @transform_3(%arg0: i32) -> (i32, i32) {
    %c0_i32 = arith.constant 0 : i32
    %c0_i32_0 = arith.constant 0 : i32
    %c0_i32_1 = arith.constant 0 : i32
    return %c0_i32, %c0_i32_0 : i32, i32
  }
  func.func @transform_4(%arg0: i32) -> (i32, i32) {
    %c0_i32 = arith.constant 0 : i32
    %c0_i32_0 = arith.constant 0 : i32
    %c0_i32_1 = arith.constant 0 : i32
    return %c0_i32, %c0_i32_0 : i32, i32
  }
  func.func @transform_5(%arg0: i32) -> (i32, i32) {
    %c0_i32 = arith.constant 0 : i32
    %c0_i32_0 = arith.constant 0 : i32
    return %arg0, %c0_i32 : i32, i32
  }
}

</mosaic_0001>

<llo_original>
// kernel: tpu_custom_call.1
$region0: #{tpu_custom_call.1}
  #allocation0 [shape = 'u32[]', space=smem, size = 0x4, offset = 0x4, fixed_abs, tag = 'smem constant byte address 0x4 - core index']
  #allocation1 [shape = 'u32[144,128]{1,0:T(1,128)}', space=vmem, size = 0x12000, scoped, tag = 'internal scratch']
  %s0 = inlined_call_operand.vmem [shape: f32[128,4], index: 0, kind: input, shape index: {}]
  %s1 = inlined_call_operand.vmem [shape: bf16[4,32], index: 1, kind: input, shape index: {}]
  %s2 = inlined_call_operand.vmem [shape: bf16[32,32], index: 2, kind: input, shape index: {}]
  %s3 = inlined_call_operand.vmem [shape: bf16[32,128], index: 3, kind: input, shape index: {}]
  %s4 = inlined_call_operand.vmem [shape: f32[3,128], index: 4, kind: input, shape index: {}]
  %s5 = inlined_call_operand.hbm [shape: f32[128,128], index: 5, kind: output, shape index: {}]
  %s6 = sld [smem:[#allocation0]]
  $region30: #{tpu_custom_call.1} parent=0
    _
  %s8 = ssub.s32 1, %s6
  %s9 = scalar_select 0, %s8, %s6
  $region1: #{tpu_custom_call.1} parent=0
    #allocation2 [shape = 'u8[65536]{0}', space=vmem, size = 0x10000, scoped, tag = 'output window, operand 0, single buffered']
    #allocation3 [shape = 's32[1]{0}', space=sflag, size = 0x4, scoped, tag = 'scoped memory for tpu_custom_call.1']
    %10 = vsyncpa [#allocation3], 0
    // Predicated region
    $region2: #{tpu_custom_call.1} parent=1 // pred_check
      _
    $region3: #{tpu_custom_call.1} parent=1 // pred_check_branch
      %12 = sbr.rel (0) target = $region5
    $region4: #{tpu_custom_call.1} parent=1 // pred_region
      _
    $region5: #{tpu_custom_call.1} parent=1 // pred_fallthru
      _
    // Predicated region
    $region6: #{tpu_custom_call.1} parent=1 // pred_check
      _
    $region7: #{tpu_custom_call.1} parent=1 // pred_check_branch
      %14 = sbr.rel (0) target = $region9
    $region8: #{tpu_custom_call.1} parent=1 // pred_region
      _
    $region9: #{tpu_custom_call.1} parent=1 // pred_fallthru
      _
    // Predicated region
    $region10: #{tpu_custom_call.1} parent=1 // pred_check
      _
    $region11: #{tpu_custom_call.1} parent=1 // pred_check_branch
      %16 = sbr.rel (0) target = $region13
    $region12: #{tpu_custom_call.1} parent=1 // pred_region
      _
    $region13: #{tpu_custom_call.1} parent=1 // pred_fallthru
      _
    // Predicated region
    $region14: #{tpu_custom_call.1} parent=1 // pred_check
      _
    $region15: #{tpu_custom_call.1} parent=1 // pred_check_branch
      %18 = sbr.rel (0) target = $region17
    $region16: #{tpu_custom_call.1} parent=1 // pred_region
      _
    $region17: #{tpu_custom_call.1} parent=1 // pred_fallthru
      _
    // Predicated region
    $region18: #{tpu_custom_call.1} parent=1 // pred_check
      _
    $region19: #{tpu_custom_call.1} parent=1 // pred_check_branch
      %20 = sbr.rel (0) target = $region21
    $region20: #{tpu_custom_call.1} parent=1 // pred_region
      _
    $region21: #{tpu_custom_call.1} parent=1 // pred_fallthru
      _
    %v22 = vld [vmem:[%s0] sm:$0xff]
    %v23 = vld [vmem:[%s0 + $0x8] sm:$0xff]
    %v24 = vld [vmem:[%s0 + $0x10] sm:$0xff]
    %v25 = vld [vmem:[%s0 + $0x18] sm:$0xff]
    %v26 = vld [vmem:[%s0 + $0x20] sm:$0xff]
    %v27 = vld [vmem:[%s0 + $0x28] sm:$0xff]
    %v28 = vld [vmem:[%s0 + $0x30] sm:$0xff]
    %v29 = vld [vmem:[%s0 + $0x38] sm:$0xff]
    %v30 = vld [vmem:[%s0 + $0x40] sm:$0xff]
    %v31 = vld [vmem:[%s0 + $0x48] sm:$0xff]
    %v32 = vld [vmem:[%s0 + $0x50] sm:$0xff]
    %v33 = vld [vmem:[%s0 + $0x58] sm:$0xff]
    %v34 = vld [vmem:[%s0 + $0x60] sm:$0xff]
    %v35 = vld [vmem:[%s0 + $0x68] sm:$0xff]
    %v36 = vld [vmem:[%s0 + $0x70] sm:$0xff]
    %v37 = vld [vmem:[%s0 + $0x78] sm:$0xff]
    %v38 = vld [vmem:[%s4] sm:$0x7]
    %v39 = vpack.c.bf16 %v23, %v22
    %v40 = vpack.c.bf16 %v25, %v24
    %v41 = vpack.c.bf16 %v27, %v26
    %v42 = vpack.c.bf16 %v29, %v28
    %v43 = vpack.c.bf16 %v31, %v30
    %v44 = vpack.c.bf16 %v33, %v32
    %v45 = vpack.c.bf16 %v35, %v34
    %v46 = vpack.c.bf16 %v37, %v36
    %v47 = vld [vmem:[%s1] sm:$0x3]
    %v48 = vlaneseq
    %v49 = vshrl.u32 %v48, 7
    %v50 = vsub.s32 0, %v49
    %v51 = vrot.slane %v38, %v50
    %vm52 = vcmask 31744
    %v54 = vsel %vm52, %v39, 0
    %v57 = vsel %vm52, %v40, 0
    %v60 = vsel %vm52, %v41, 0
    %v63 = vsel %vm52, %v42, 0
    %v66 = vsel %vm52, %v43, 0
    %v69 = vsel %vm52, %v44, 0
    %v72 = vsel %vm52, %v45, 0
    %v75 = vsel %vm52, %v46, 0
    %vm77 = vcmask 1041408
    %v79 = vsel %vm77, %v47, 0
    %81 = vmatprep.subr.bf16.mxu0 0
    %82 = vmatpush1.bf16.msra.mxu0 0
    %83 = vmatprep.subr.bf16.mxu0 0
    %84 = vmatpush1.bf16.msra.mxu0 0
    %85 = vmatprep.subr.bf16.mxu0 0
    %86 = vmatpush1.bf16.msra.mxu0 0
    %87 = vmatprep.subr.bf16.mxu0 0
    %88 = vmatpush1.bf16.msra.mxu0 0
    %89 = vmatprep.subr.bf16.mxu0 0
    %90 = vmatpush1.bf16.msra.mxu0 0
    %91 = vmatprep.subr.bf16.mxu0 0
    %92 = vmatpush1.bf16.msra.mxu0 0
    %93 = vmatprep.subr.bf16.mxu0 0
    %94 = vmatpush1.bf16.msra.mxu0 0
    %95 = vmatprep.subr.bf16.mxu0 0
    %96 = vmatpush1.bf16.msra.mxu0 %v79
    %97 = vmatprep.subr.bf16.mxu0 0
    %98 = vmatpush2.bf16.msra.mxu0 0
    %99 = vmatprep.subr.bf16.mxu0 0
    %100 = vmatpush2.bf16.msra.mxu0 0
    %101 = vmatprep.subr.bf16.mxu0 0
    %102 = vmatpush2.bf16.msra.mxu0 0
    %103 = vmatprep.subr.bf16.mxu0 0
    %104 = vmatpush2.bf16.msra.mxu0 0
    %105 = vmatprep.subr.bf16.mxu0 0
    %106 = vmatpush2.bf16.msra.mxu0 0
    %107 = vmatprep.subr.bf16.mxu0 0
    %108 = vmatpush2.bf16.msra.mxu0 0
    %109 = vmatprep.subr.bf16.mxu0 0
    %110 = vmatpush2.bf16.msra.mxu0 0
    %111 = vmatprep.subr.bf16.mxu0 0
    %112 = vmatpush2.bf16.msra.mxu0 0
    %113 = vmatprep.mubr.bf16.mxu0 0
    %114 = vmatmul.mubr.bf16.gmra.mxu0 %v54
    %v115 = vpop.f32.mrf.mxu0
    %v116 = vadd.f32 %v51, %v115
    %v117 = vpop.f32.mrf.mxu0
    %v118 = vpop.f32.mrf.mxu0
    %v119 = vadd.f32 %v51, %v118
    %v120 = vpop.f32.mrf.mxu0
    %121 = vmatprep.mubr.bf16.mxu0 0
    %122 = vmatmul.mubr.bf16.gmra.mxu0 %v57
    %v123 = vpop.f32.mrf.mxu0
    %v124 = vadd.f32 %v51, %v123
    %v125 = vpop.f32.mrf.mxu0
    %v126 = vpop.f32.mrf.mxu0
    %v127 = vadd.f32 %v51, %v126
    %v128 = vpop.f32.mrf.mxu0
    %129 = vmatprep.mubr.bf16.mxu0 0
    %130 = vmatmul.mubr.bf16.gmra.mxu0 %v60
    %v131 = vpop.f32.mrf.mxu0
    %v132 = vadd.f32 %v51, %v131
    %v133 = vpop.f32.mrf.mxu0
    %v134 = vpop.f32.mrf.mxu0
    %v135 = vadd.f32 %v51, %v134
    %v136 = vpop.f32.mrf.mxu0
    %137 = vmatprep.mubr.bf16.mxu0 0
    %138 = vmatmul.mubr.bf16.gmra.mxu0 %v63
    %v139 = vpop.f32.mrf.mxu0
    %v140 = vadd.f32 %v51, %v139
    %v141 = vpop.f32.mrf.mxu0
    %v142 = vpop.f32.mrf.mxu0
    %v143 = vadd.f32 %v51, %v142
    %v144 = vpop.f32.mrf.mxu0
    %145 = vmatprep.mubr.bf16.mxu0 0
    %146 = vmatmul.mubr.bf16.gmra.mxu0 %v66
    %v147 = vpop.f32.mrf.mxu0
    %v148 = vadd.f32 %v51, %v147
    %v149 = vpop.f32.mrf.mxu0
    %v150 = vpop.f32.mrf.mxu0
    %v151 = vadd.f32 %v51, %v150
    %v152 = vpop.f32.mrf.mxu0
    %153 = vmatprep.mubr.bf16.mxu0 0
    %154 = vmatmul.mubr.bf16.gmra.mxu0 %v69
    %v155 = vpop.f32.mrf.mxu0
    %v156 = vadd.f32 %v51, %v155
    %v157 = vpop.f32.mrf.mxu0
    %v158 = vpop.f32.mrf.mxu0
    %v159 = vadd.f32 %v51, %v158
    %v160 = vpop.f32.mrf.mxu0
    %161 = vmatprep.mubr.bf16.mxu0 0
    %162 = vmatmul.mubr.bf16.gmra.mxu0 %v72
    %v163 = vpop.f32.mrf.mxu0
    %v164 = vadd.f32 %v51, %v163
    %v165 = vpop.f32.mrf.mxu0
    %v166 = vpop.f32.mrf.mxu0
    %v167 = vadd.f32 %v51, %v166
    %v168 = vpop.f32.mrf.mxu0
    %169 = vmatprep.mubr.bf16.mxu0 0
    %170 = vmatmul.mubr.bf16.gmra.mxu0 %v75
    %v171 = vpop.f32.mrf.mxu0
    %v172 = vadd.f32 %v51, %v171
    %v173 = vpop.f32.mrf.mxu0
    %v174 = vpop.f32.mrf.mxu0
    %v175 = vadd.f32 %v51, %v174
    %v176 = vpop.f32.mrf.mxu0
    %177 = vdwg.mxu0
    %v178 = vmax.f32 %v116, 0.0
    %v179 = vmax.f32 %v119, 0.0
    %v180 = vmax.f32 %v124, 0.0
    %v181 = vmax.f32 %v127, 0.0
    %v182 = vmax.f32 %v132, 0.0
    %v183 = vmax.f32 %v135, 0.0
    %v184 = vmax.f32 %v140, 0.0
    %v185 = vmax.f32 %v143, 0.0
    %v186 = vmax.f32 %v148, 0.0
    %v187 = vmax.f32 %v151, 0.0
    %v188 = vmax.f32 %v156, 0.0
    %v189 = vmax.f32 %v159, 0.0
    %v190 = vmax.f32 %v164, 0.0
    %v191 = vmax.f32 %v167, 0.0
    %v192 = vmax.f32 %v172, 0.0
    %v193 = vmax.f32 %v175, 0.0
    %v194 = vpack.c.bf16 %v179, %v178
    %v195 = vpack.c.bf16 %v181, %v180
    %v196 = vpack.c.bf16 %v183, %v182
    %v197 = vpack.c.bf16 %v185, %v184
    %v198 = vpack.c.bf16 %v187, %v186
    %v199 = vpack.c.bf16 %v189, %v188
    %v200 = vpack.c.bf16 %v191, %v190
    %v201 = vpack.c.bf16 %v193, %v192
    %v202 = vld [vmem:[%s2] sm:$0xf]
    %v203 = vld [vmem:[%s2 + $0x4] sm:$0xf]
    %v204 = vld [vmem:[%s2 + $0x8] sm:$0xf]
    %v205 = vld [vmem:[%s2 + $0xc] sm:$0xf]
    %v206 = vlaneseq
    %v207 = vshrl.u32 %v206, 7
    %v208 = vsub.s32 1, %v207
    %v209 = vrot.slane %v38, %v208
    %v214 = vunpack.c.l.b16 %v202
    %v215 = vunpack.c.l.b16 %v203
    %v216 = vunpack.c.l.b16 %v204
    %v217 = vunpack.c.l.b16 %v205
    %v218 = vpack.c.b16 %v215, %v214
    %v219 = vpack.c.b16 %v217, %v216
    %vm222 = vcmask 261120
    %v224 = vsel %vm222, %v194, 0
    %v227 = vsel %vm222, %v195, 0
    %v230 = vsel %vm222, %v196, 0
    %v233 = vsel %vm222, %v197, 0
    %v236 = vsel %vm222, %v198, 0
    %v239 = vsel %vm222, %v199, 0
    %v242 = vsel %vm222, %v200, 0
    %v245 = vsel %vm222, %v201, 0
    %247 = vmatprep.subr.bf16.mxu0 0
    %248 = vmatpush1.bf16.msra.mxu0 0
    %249 = vmatprep.subr.bf16.mxu0 0
    %250 = vmatpush1.bf16.msra.mxu0 0
    %251 = vmatprep.subr.bf16.mxu0 0
    %252 = vmatpush1.bf16.msra.mxu0 0
    %253 = vmatprep.subr.bf16.mxu0 0
    %254 = vmatpush1.bf16.msra.mxu0 0
    %255 = vmatprep.subr.bf16.mxu0 0
    %256 = vmatpush1.bf16.msra.mxu0 0
    %257 = vmatprep.subr.bf16.mxu0 0
    %258 = vmatpush1.bf16.msra.mxu0 0
    %259 = vmatprep.subr.bf16.mxu0 0
    %260 = vmatpush1.bf16.msra.mxu0 %v219
    %261 = vmatprep.subr.bf16.mxu0 0
    %262 = vmatpush1.bf16.msra.mxu0 %v218
    %263 = vmatprep.subr.bf16.mxu0 0
    %264 = vmatpush2.bf16.msra.mxu0 0
    %265 = vmatprep.subr.bf16.mxu0 0
    %266 = vmatpush2.bf16.msra.mxu0 0
    %267 = vmatprep.subr.bf16.mxu0 0
    %268 = vmatpush2.bf16.msra.mxu0 0
    %269 = vmatprep.subr.bf16.mxu0 0
    %270 = vmatpush2.bf16.msra.mxu0 0
    %271 = vmatprep.subr.bf16.mxu0 0
    %272 = vmatpush2.bf16.msra.mxu0 0
    %273 = vmatprep.subr.bf16.mxu0 0
    %274 = vmatpush2.bf16.msra.mxu0 0
    %275 = vmatprep.subr.bf16.mxu0 0
    %276 = vmatpush2.bf16.msra.mxu0 0
    %277 = vmatprep.subr.bf16.mxu0 0
    %278 = vmatpush2.bf16.msra.mxu0 0
    %279 = vmatprep.mubr.bf16.mxu0 0
    %280 = vmatmul.mubr.bf16.gmra.mxu0 %v224
    %v281 = vpop.f32.mrf.mxu0
    %v282 = vadd.f32 %v209, %v281
    %v283 = vpop.f32.mrf.mxu0
    %v284 = vpop.f32.mrf.mxu0
    %v285 = vadd.f32 %v209, %v284
    %v286 = vpop.f32.mrf.mxu0
    %287 = vmatprep.mubr.bf16.mxu0 0
    %288 = vmatmul.mubr.bf16.gmra.mxu0 %v227
    %v289 = vpop.f32.mrf.mxu0
    %v290 = vadd.f32 %v209, %v289
    %v291 = vpop.f32.mrf.mxu0
    %v292 = vpop.f32.mrf.mxu0
    %v293 = vadd.f32 %v209, %v292
    %v294 = vpop.f32.mrf.mxu0
    %295 = vmatprep.mubr.bf16.mxu0 0
    %296 = vmatmul.mubr.bf16.gmra.mxu0 %v230
    %v297 = vpop.f32.mrf.mxu0
    %v298 = vadd.f32 %v209, %v297
    %v299 = vpop.f32.mrf.mxu0
    %v300 = vpop.f32.mrf.mxu0
    %v301 = vadd.f32 %v209, %v300
    %v302 = vpop.f32.mrf.mxu0
    %303 = vmatprep.mubr.bf16.mxu0 0
    %304 = vmatmul.mubr.bf16.gmra.mxu0 %v233
    %v305 = vpop.f32.mrf.mxu0
    %v306 = vadd.f32 %v209, %v305
    %v307 = vpop.f32.mrf.mxu0
    %v308 = vpop.f32.mrf.mxu0
    %v309 = vadd.f32 %v209, %v308
    %v310 = vpop.f32.mrf.mxu0
    %311 = vmatprep.mubr.bf16.mxu0 0
    %312 = vmatmul.mubr.bf16.gmra.mxu0 %v236
    %v313 = vpop.f32.mrf.mxu0
    %v314 = vadd.f32 %v209, %v313
    %v315 = vpop.f32.mrf.mxu0
    %v316 = vpop.f32.mrf.mxu0
    %v317 = vadd.f32 %v209, %v316
    %v318 = vpop.f32.mrf.mxu0
    %319 = vmatprep.mubr.bf16.mxu0 0
    %320 = vmatmul.mubr.bf16.gmra.mxu0 %v239
    %v321 = vpop.f32.mrf.mxu0
    %v322 = vadd.f32 %v209, %v321
    %v323 = vpop.f32.mrf.mxu0
    %v324 = vpop.f32.mrf.mxu0
    %v325 = vadd.f32 %v209, %v324
    %v326 = vpop.f32.mrf.mxu0
    %327 = vmatprep.mubr.bf16.mxu0 0
    %328 = vmatmul.mubr.bf16.gmra.mxu0 %v242
    %v329 = vpop.f32.mrf.mxu0
    %v330 = vadd.f32 %v209, %v329
    %v331 = vpop.f32.mrf.mxu0
    %v332 = vpop.f32.mrf.mxu0
    %v333 = vadd.f32 %v209, %v332
    %v334 = vpop.f32.mrf.mxu0
    %335 = vmatprep.mubr.bf16.mxu0 0
    %336 = vmatmul.mubr.bf16.gmra.mxu0 %v245
    %v337 = vpop.f32.mrf.mxu0
    %v338 = vadd.f32 %v209, %v337
    %v339 = vpop.f32.mrf.mxu0
    %v340 = vpop.f32.mrf.mxu0
    %v341 = vadd.f32 %v209, %v340
    %v342 = vpop.f32.mrf.mxu0
    %343 = vdwg.mxu0
    %v344 = vmax.f32 %v282, 0.0
    %v345 = vmax.f32 %v285, 0.0
    %v346 = vmax.f32 %v290, 0.0
    %v347 = vmax.f32 %v293, 0.0
    %v348 = vmax.f32 %v298, 0.0
    %v349 = vmax.f32 %v301, 0.0
    %v350 = vmax.f32 %v306, 0.0
    %v351 = vmax.f32 %v309, 0.0
    %v352 = vmax.f32 %v314, 0.0
    %v353 = vmax.f32 %v317, 0.0
    %v354 = vmax.f32 %v322, 0.0
    %v355 = vmax.f32 %v325, 0.0
    %v356 = vmax.f32 %v330, 0.0
    %v357 = vmax.f32 %v333, 0.0
    %v358 = vmax.f32 %v338, 0.0
    %v359 = vmax.f32 %v341, 0.0
    %v360 = vpack.c.bf16 %v345, %v344
    %v361 = vpack.c.bf16 %v347, %v346
    %v362 = vpack.c.bf16 %v349, %v348
    %v363 = vpack.c.bf16 %v351, %v350
    %v364 = vpack.c.bf16 %v353, %v352
    %v365 = vpack.c.bf16 %v355, %v354
    %v366 = vpack.c.bf16 %v357, %v356
    %v367 = vpack.c.bf16 %v359, %v358
    %v368 = vld [vmem:[%s3] sm:$0xf]
    %v369 = vld [vmem:[%s3 + $0x4] sm:$0xf]
    %v370 = vld [vmem:[%s3 + $0x8] sm:$0xf]
    %v371 = vld [vmem:[%s3 + $0xc] sm:$0xf]
    %v372 = vlaneseq
    %v373 = vshrl.u32 %v372, 7
    %v374 = vsub.s32 2, %v373
    %v375 = vrot.slane %v38, %v374
    %v380 = vunpack.c.l.b16 %v368
    %v381 = vunpack.c.l.b16 %v369
    %v382 = vunpack.c.l.b16 %v370
    %v383 = vunpack.c.l.b16 %v371
    %v384 = vpack.c.b16 %v381, %v380
    %v385 = vpack.c.b16 %v383, %v382
    %v389 = vsel %vm222, %v360, 0
    %v392 = vsel %vm222, %v361, 0
    %v395 = vsel %vm222, %v362, 0
    %v398 = vsel %vm222, %v363, 0
    %v401 = vsel %vm222, %v364, 0
    %v404 = vsel %vm222, %v365, 0
    %v407 = vsel %vm222, %v366, 0
    %v410 = vsel %vm222, %v367, 0
    %412 = vmatprep.subr.bf16.mxu0 0
    %413 = vmatpush1.bf16.msra.mxu0 0
    %414 = vmatprep.subr.bf16.mxu0 0
    %415 = vmatpush1.bf16.msra.mxu0 0
    %416 = vmatprep.subr.bf16.mxu0 0
    %417 = vmatpush1.bf16.msra.mxu0 0
    %418 = vmatprep.subr.bf16.mxu0 0
    %419 = vmatpush1.bf16.msra.mxu0 0
    %420 = vmatprep.subr.bf16.mxu0 0
    %421 = vmatpush1.bf16.msra.mxu0 0
    %422 = vmatprep.subr.bf16.mxu0 0
    %423 = vmatpush1.bf16.msra.mxu0 0
    %424 = vmatprep.subr.bf16.mxu0 0
    %425 = vmatpush1.bf16.msra.mxu0 %v385
    %426 = vmatprep.subr.bf16.mxu0 0
    %427 = vmatpush1.bf16.msra.mxu0 %v384
    %428 = vmatprep.subr.bf16.mxu0 0
    %429 = vmatpush2.bf16.msra.mxu0 0
    %430 = vmatprep.subr.bf16.mxu0 0
    %431 = vmatpush2.bf16.msra.mxu0 0
    %432 = vmatprep.subr.bf16.mxu0 0
    %433 = vmatpush2.bf16.msra.mxu0 0
    %434 = vmatprep.subr.bf16.mxu0 0
    %435 = vmatpush2.bf16.msra.mxu0 0
    %436 = vmatprep.subr.bf16.mxu0 0
    %437 = vmatpush2.bf16.msra.mxu0 0
    %438 = vmatprep.subr.bf16.mxu0 0
    %439 = vmatpush2.bf16.msra.mxu0 0
    %440 = vmatprep.subr.bf16.mxu0 0
    %441 = vmatpush2.bf16.msra.mxu0 0
    %442 = vmatprep.subr.bf16.mxu0 0
    %443 = vmatpush2.bf16.msra.mxu0 0
    %444 = vmatprep.mubr.bf16.mxu0 0
    %445 = vmatmul.mubr.bf16.gmra.mxu0 %v389
    %v446 = vpop.f32.mrf.mxu0
    %v447 = vadd.f32 %v375, %v446
    %v448 = vpop.f32.mrf.mxu0
    %v449 = vpop.f32.mrf.mxu0
    %v450 = vadd.f32 %v375, %v449
    %v451 = vpop.f32.mrf.mxu0
    %452 = vmatprep.mubr.bf16.mxu0 0
    %453 = vmatmul.mubr.bf16.gmra.mxu0 %v392
    %v454 = vpop.f32.mrf.mxu0
    %v455 = vadd.f32 %v375, %v454
    %v456 = vpop.f32.mrf.mxu0
    %v457 = vpop.f32.mrf.mxu0
    %v458 = vadd.f32 %v375, %v457
    %v459 = vpop.f32.mrf.mxu0
    %460 = vmatprep.mubr.bf16.mxu0 0
    %461 = vmatmul.mubr.bf16.gmra.mxu0 %v395
    %v462 = vpop.f32.mrf.mxu0
    %v463 = vadd.f32 %v375, %v462
    %v464 = vpop.f32.mrf.mxu0
    %v465 = vpop.f32.mrf.mxu0
    %v466 = vadd.f32 %v375, %v465
    %v467 = vpop.f32.mrf.mxu0
    %468 = vmatprep.mubr.bf16.mxu0 0
    %469 = vmatmul.mubr.bf16.gmra.mxu0 %v398
    %v470 = vpop.f32.mrf.mxu0
    %v471 = vadd.f32 %v375, %v470
    %v472 = vpop.f32.mrf.mxu0
    %v473 = vpop.f32.mrf.mxu0
    %v474 = vadd.f32 %v375, %v473
    %v475 = vpop.f32.mrf.mxu0
    %476 = vmatprep.mubr.bf16.mxu0 0
    %477 = vmatmul.mubr.bf16.gmra.mxu0 %v401
    %v478 = vpop.f32.mrf.mxu0
    %v479 = vadd.f32 %v375, %v478
    %v480 = vpop.f32.mrf.mxu0
    %v481 = vpop.f32.mrf.mxu0
    %v482 = vadd.f32 %v375, %v481
    %v483 = vpop.f32.mrf.mxu0
    %484 = vmatprep.mubr.bf16.mxu0 0
    %485 = vmatmul.mubr.bf16.gmra.mxu0 %v404
    %v486 = vpop.f32.mrf.mxu0
    %v487 = vadd.f32 %v375, %v486
    %v488 = vpop.f32.mrf.mxu0
    %v489 = vpop.f32.mrf.mxu0
    %v490 = vadd.f32 %v375, %v489
    %v491 = vpop.f32.mrf.mxu0
    %492 = vmatprep.mubr.bf16.mxu0 0
    %493 = vmatmul.mubr.bf16.gmra.mxu0 %v407
    %v494 = vpop.f32.mrf.mxu0
    %v495 = vadd.f32 %v375, %v494
    %v496 = vpop.f32.mrf.mxu0
    %v497 = vpop.f32.mrf.mxu0
    %v498 = vadd.f32 %v375, %v497
    %v499 = vpop.f32.mrf.mxu0
    %500 = vmatprep.mubr.bf16.mxu0 0
    %501 = vmatmul.mubr.bf16.gmra.mxu0 %v410
    %v502 = vpop.f32.mrf.mxu0
    %v503 = vadd.f32 %v375, %v502
    %v504 = vpop.f32.mrf.mxu0
    %v505 = vpop.f32.mrf.mxu0
    %v506 = vadd.f32 %v375, %v505
    %v507 = vpop.f32.mrf.mxu0
    %508 = vdwg.mxu0
    %v509 = vmax.f32 %v447, 0.0
    %v510 = vmax.f32 %v450, 0.0
    %v511 = vmax.f32 %v455, 0.0
    %v512 = vmax.f32 %v458, 0.0
    %v513 = vmax.f32 %v463, 0.0
    %v514 = vmax.f32 %v466, 0.0
    %v515 = vmax.f32 %v471, 0.0
    %v516 = vmax.f32 %v474, 0.0
    %v517 = vmax.f32 %v479, 0.0
    %v518 = vmax.f32 %v482, 0.0
    %v519 = vmax.f32 %v487, 0.0
    %v520 = vmax.f32 %v490, 0.0
    %v521 = vmax.f32 %v495, 0.0
    %v522 = vmax.f32 %v498, 0.0
    %v523 = vmax.f32 %v503, 0.0
    %v524 = vmax.f32 %v506, 0.0
    %v525 = vlaneseq
    %v526 = vand.u32 %v525, 127
    %vm527 = vcmp.lt.s32.totalorder %v526, 2
    %v528 = vsel %vm527, %v509, -1e+30
    %v529 = vsel %vm527, %v510, -1e+30
    %v530 = vsel %vm527, %v511, -1e+30
    %v531 = vsel %vm527, %v512, -1e+30
    %v532 = vsel %vm527, %v513, -1e+30
    %v533 = vsel %vm527, %v514, -1e+30
    %v534 = vsel %vm527, %v515, -1e+30
    %v535 = vsel %vm527, %v516, -1e+30
    %v536 = vsel %vm527, %v517, -1e+30
    %v537 = vsel %vm527, %v518, -1e+30
    %v538 = vsel %vm527, %v519, -1e+30
    %v539 = vsel %vm527, %v520, -1e+30
    %v540 = vsel %vm527, %v521, -1e+30
    %v541 = vsel %vm527, %v522, -1e+30
    %v542 = vsel %vm527, %v523, -1e+30
    %v543 = vsel %vm527, %v524, -1e+30
    %544 = vmax.xlane.f32.xlu0 %v528
    %v545 = vpop.xlane.xlu0 %544
    %546 = vmax.xlane.f32.xlu0 %v529
    %v547 = vpop.xlane.xlu0 %546
    %548 = vmax.xlane.f32.xlu0 %v530
    %v549 = vpop.xlane.xlu0 %548
    %550 = vmax.xlane.f32.xlu0 %v531
    %v551 = vpop.xlane.xlu0 %550
    %552 = vmax.xlane.f32.xlu0 %v532
    %v553 = vpop.xlane.xlu0 %552
    %554 = vmax.xlane.f32.xlu0 %v533
    %v555 = vpop.xlane.xlu0 %554
    %556 = vmax.xlane.f32.xlu0 %v534
    %v557 = vpop.xlane.xlu0 %556
    %558 = vmax.xlane.f32.xlu0 %v535
    %v559 = vpop.xlane.xlu0 %558
    %560 = vmax.xlane.f32.xlu0 %v536
    %v561 = vpop.xlane.xlu0 %560
    %562 = vmax.xlane.f32.xlu0 %v537
    %v563 = vpop.xlane.xlu0 %562
    %564 = vmax.xlane.f32.xlu0 %v538
    %v565 = vpop.xlane.xlu0 %564
    %566 = vmax.xlane.f32.xlu0 %v539
    %v567 = vpop.xlane.xlu0 %566
    %568 = vmax.xlane.f32.xlu0 %v540
    %v569 = vpop.xlane.xlu0 %568
    %570 = vmax.xlane.f32.xlu0 %v541
    %v571 = vpop.xlane.xlu0 %570
    %572 = vmax.xlane.f32.xlu0 %v542
    %v573 = vpop.xlane.xlu0 %572
    %574 = vmax.xlane.f32.xlu0 %v543
    %v575 = vpop.xlane.xlu0 %574
    %v576 = vsub.f32 %v528, %v545
    %v577 = vsub.f32 %v529, %v547
    %v578 = vsub.f32 %v530, %v549
    %v579 = vsub.f32 %v531, %v551
    %v580 = vsub.f32 %v532, %v553
    %v581 = vsub.f32 %v533, %v555
    %v582 = vsub.f32 %v534, %v557
    %v583 = vsub.f32 %v535, %v559
    %v584 = vsub.f32 %v536, %v561
    %v585 = vsub.f32 %v537, %v563
    %v586 = vsub.f32 %v538, %v565
    %v587 = vsub.f32 %v539, %v567
    %v588 = vsub.f32 %v540, %v569
    %v589 = vsub.f32 %v541, %v571
    %v590 = vsub.f32 %v542, %v573
    %v591 = vsub.f32 %v543, %v575
    %v592 = vmul.f32 %v576, 1.442695
    %v593 = vpow.pop %v592
    %v594 = vmul.f32 %v577, 1.442695
    %v595 = vpow.pop %v594
    %v596 = vmul.f32 %v578, 1.442695
    %v597 = vpow.pop %v596
    %v598 = vmul.f32 %v579, 1.442695
    %v599 = vpow.pop %v598
    %v600 = vmul.f32 %v580, 1.442695
    %v601 = vpow.pop %v600
    %v602 = vmul.f32 %v581, 1.442695
    %v603 = vpow.pop %v602
    %v604 = vmul.f32 %v582, 1.442695
    %v605 = vpow.pop %v604
    %v606 = vmul.f32 %v583, 1.442695
    %v607 = vpow.pop %v606
    %v608 = vmul.f32 %v584, 1.442695
    %v609 = vpow.pop %v608
    %v610 = vmul.f32 %v585, 1.442695
    %v611 = vpow.pop %v610
    %v612 = vmul.f32 %v586, 1.442695
    %v613 = vpow.pop %v612
    %v614 = vmul.f32 %v587, 1.442695
    %v615 = vpow.pop %v614
    %v616 = vmul.f32 %v588, 1.442695
    %v617 = vpow.pop %v616
    %v618 = vmul.f32 %v589, 1.442695
    %v619 = vpow.pop %v618
    %v620 = vmul.f32 %v590, 1.442695
    %v621 = vpow.pop %v620
    %v622 = vmul.f32 %v591, 1.442695
    %v623 = vpow.pop %v622
    %v624 = vsel %vm527, %v593, 0.0
    %v625 = vsel %vm527, %v595, 0.0
    %v626 = vsel %vm527, %v597, 0.0
    %v627 = vsel %vm527, %v599, 0.0
    %v628 = vsel %vm527, %v601, 0.0
    %v629 = vsel %vm527, %v603, 0.0
    %v630 = vsel %vm527, %v605, 0.0
    %v631 = vsel %vm527, %v607, 0.0
    %v632 = vsel %vm527, %v609, 0.0
    %v633 = vsel %vm527, %v611, 0.0
    %v634 = vsel %vm527, %v613, 0.0
    %v635 = vsel %vm527, %v615, 0.0
    %v636 = vsel %vm527, %v617, 0.0
    %v637 = vsel %vm527, %v619, 0.0
    %v638 = vsel %vm527, %v621, 0.0
    %v639 = vsel %vm527, %v623, 0.0
    %640 = vadd.xlane.f32.xlu0 %v624
    %v641 = vpop.xlane.xlu0 %640
    %642 = vadd.xlane.f32.xlu0 %v625
    %v643 = vpop.xlane.xlu0 %642
    %644 = vadd.xlane.f32.xlu0 %v626
    %v645 = vpop.xlane.xlu0 %644
    %646 = vadd.xlane.f32.xlu0 %v627
    %v647 = vpop.xlane.xlu0 %646
    %648 = vadd.xlane.f32.xlu0 %v628
    %v649 = vpop.xlane.xlu0 %648
    %650 = vadd.xlane.f32.xlu0 %v629
    %v651 = vpop.xlane.xlu0 %650
    %652 = vadd.xlane.f32.xlu0 %v630
    %v653 = vpop.xlane.xlu0 %652
    %654 = vadd.xlane.f32.xlu0 %v631
    %v655 = vpop.xlane.xlu0 %654
    %656 = vadd.xlane.f32.xlu0 %v632
    %v657 = vpop.xlane.xlu0 %656
    %658 = vadd.xlane.f32.xlu0 %v633
    %v659 = vpop.xlane.xlu0 %658
    %660 = vadd.xlane.f32.xlu0 %v634
    %v661 = vpop.xlane.xlu0 %660
    %662 = vadd.xlane.f32.xlu0 %v635
    %v663 = vpop.xlane.xlu0 %662
    %664 = vadd.xlane.f32.xlu0 %v636
    %v665 = vpop.xlane.xlu0 %664
    %666 = vadd.xlane.f32.xlu0 %v637
    %v667 = vpop.xlane.xlu0 %666
    %668 = vadd.xlane.f32.xlu0 %v638
    %v669 = vpop.xlane.xlu0 %668
    %670 = vadd.xlane.f32.xlu0 %v639
    %v671 = vpop.xlane.xlu0 %670
    %v672 = vrcp.pop %v641
    %v673 = vrcp.pop %v643
    %v674 = vrcp.pop %v645
    %v675 = vrcp.pop %v647
    %v676 = vrcp.pop %v649
    %v677 = vrcp.pop %v651
    %v678 = vrcp.pop %v653
    %v679 = vrcp.pop %v655
    %v680 = vrcp.pop %v657
    %v681 = vrcp.pop %v659
    %v682 = vrcp.pop %v661
    %v683 = vrcp.pop %v663
    %v684 = vrcp.pop %v665
    %v685 = vrcp.pop %v667
    %v686 = vrcp.pop %v669
    %v687 = vrcp.pop %v671
    %v688 = vmul.f32 %v624, %v672
    %v689 = vmul.f32 %v625, %v673
    %v690 = vmul.f32 %v626, %v674
    %v691 = vmul.f32 %v627, %v675
    %v692 = vmul.f32 %v628, %v676
    %v693 = vmul.f32 %v629, %v677
    %v694 = vmul.f32 %v630, %v678
    %v695 = vmul.f32 %v631, %v679
    %v696 = vmul.f32 %v632, %v680
    %v697 = vmul.f32 %v633, %v681
    %v698 = vmul.f32 %v634, %v682
    %v699 = vmul.f32 %v635, %v683
    %v700 = vmul.f32 %v636, %v684
    %v701 = vmul.f32 %v637, %v685
    %v702 = vmul.f32 %v638, %v686
    %v703 = vmul.f32 %v639, %v687
    %704 = vst [vmem:[#allocation2] sm:$0xff] %v688
    %705 = vst [vmem:[#allocation2 + $0x8] sm:$0xff] %v689
    %706 = vst [vmem:[#allocation2 + $0x10] sm:$0xff] %v690
    %707 = vst [vmem:[#allocation2 + $0x18] sm:$0xff] %v691
    %708 = vst [vmem:[#allocation2 + $0x20] sm:$0xff] %v692
    %709 = vst [vmem:[#allocation2 + $0x28] sm:$0xff] %v693
    %710 = vst [vmem:[#allocation2 + $0x30] sm:$0xff] %v694
    %711 = vst [vmem:[#allocation2 + $0x38] sm:$0xff] %v695
    %712 = vst [vmem:[#allocation2 + $0x40] sm:$0xff] %v696
    %713 = vst [vmem:[#allocation2 + $0x48] sm:$0xff] %v697
    %714 = vst [vmem:[#allocation2 + $0x50] sm:$0xff] %v698
    %715 = vst [vmem:[#allocation2 + $0x58] sm:$0xff] %v699
    %716 = vst [vmem:[#allocation2 + $0x60] sm:$0xff] %v700
    %717 = vst [vmem:[#allocation2 + $0x68] sm:$0xff] %v701
    %718 = vst [vmem:[#allocation2 + $0x70] sm:$0xff] %v702
    %719 = vst [vmem:[#allocation2 + $0x78] sm:$0xff] %v703
    // Predicated region
    $region22: #{tpu_custom_call.1} parent=1 // pred_check
      _
    $region23: #{tpu_custom_call.1} parent=1 // pred_check_branch
      %721 = sbr.rel (0) target = $region25
    $region24: #{tpu_custom_call.1} parent=1 // pred_region
      %s723 = ssub.s32 2048, 2048
      %724 = vsyncadd [#allocation3], %s723
      %s725 = sshll.u32 [#allocation2], 4
      %s726 = int_to_ptr.vmem [resolvable:$true] %s725
      %731 = dma.vmem_to_hbm [thread:$0]  %s726, 2048, %s5, [#allocation3], 128, 128, 8
    $region25: #{tpu_custom_call.1} parent=1 // pred_fallthru
      _
    // Predicated region
    $region26: #{tpu_custom_call.1} parent=1 // pred_check
      _
    $region27: #{tpu_custom_call.1} parent=1 // pred_check_branch
      %733 = sbr.rel (0) target = $region29
    $region28: #{tpu_custom_call.1} parent=1 // pred_region
      %734 = dma.done [#allocation3], 2048
    $region29: #{tpu_custom_call.1} parent=1 // pred_fallthru
      _
    %735 = vsyncpa [#allocation3], 1

</llo_original>
